<compile_context>
chip_gen: v7x
topology: tpu7x:2x2x1
jax: 0.10.0
libtpu: 0.0.40
codegen_flags: <defaults>
</compile_context>

<pallas_src>
import jax
import jax.numpy as jnp
from jax.experimental import pallas as pl
from jax.experimental.pallas import tpu as pltpu

_SCALE = 1.0 / 127.5
_LANE_CANDIDATES = (1024, 896, 768, 640, 512, 384, 256, 128)  # lane-dense first
_TARGET_TILE_ELEMS = 1 << 20  # ~4 MiB per f32 tile buffer


def _lambda_kernel(x_ref, o_ref):
    # elementwise hot path: x / 127.5 - 1.0 (computed in f32)
    x = x_ref[...].astype(jnp.float32)
    o_ref[...] = (x * jnp.float32(_SCALE) - jnp.float32(1.0)).astype(o_ref.dtype)


def lambda_layer(x: jax.Array, out_dtype=None) -> jax.Array:
    """Applies lambda x: x / 127.5 - 1.0 elementwise via a Pallas TPU kernel.

    Accepts any shape.  Float inputs keep their dtype; integer (e.g. uint8)
    inputs produce float32 output unless `out_dtype` (e.g. jnp.bfloat16) is
    given explicitly.
    """
    orig_shape = x.shape
    if out_dtype is None:
        out_dtype = x.dtype if jnp.issubdtype(x.dtype, jnp.floating) else jnp.float32
    out_dtype = jnp.dtype(out_dtype)

    total = 1
    for d in orig_shape:
        total *= int(d)

    if total == 0:
        return jnp.zeros(orig_shape, out_dtype)

    # ---- choose a pad-free 2-D view (rows, lanes) ---------------------------
    lanes = None
    for cand in _LANE_CANDIDATES:
        if total % cand == 0:
            lanes = cand
            break
    if lanes is None:
        # Natural trailing dim: a full-extent last block dim is exempt from
        # the 128-lane rule; masked vst beats two extra full-HBM pad/slice
        # passes for the mem-bound normalize.
        lanes = int(orig_shape[-1]) if len(orig_shape) else total
        if lanes <= 0 or total % lanes != 0:
            lanes = total
    rows = total // lanes

    # ---- pick a block height -------------------------------------------------
    target_rows = max(1, _TARGET_TILE_ELEMS // lanes)
    # >=2 grid steps for anything non-trivial so both v7x TCs split the stream.
    num_tiles = max(2, pl.cdiv(rows, target_rows))
    block_rows = pl.cdiv(rows, num_tiles)
    block_rows = ((block_rows + 7) // 8) * 8  # sublane (8) alignment
    if block_rows >= rows:
        block_rows = rows  # single full-extent block (exempt from (8,128) rule)

    grid = (pl.cdiv(rows, block_rows),)

    x2d = x.reshape(rows, lanes)  # contiguous reshape: no data movement

    in_tile_bytes = block_rows * lanes * x2d.dtype.itemsize
    out_tile_bytes = block_rows * lanes * out_dtype.itemsize
    # 2 buffers each for input and output tiles, plus headroom.  Explicit so
    # v5e's 16 MiB scoped-VMEM default never forces smaller pipelining.
    vmem_limit = 2 * (in_tile_bytes + out_tile_bytes) + (8 << 20)

    cost = pl.CostEstimate(
        flops=2 * total,
        transcendentals=0,
        bytes_accessed=total * (x2d.dtype.itemsize + out_dtype.itemsize),
    )

    out2d = pl.pallas_call(
        _lambda_kernel,
        out_shape=jax.ShapeDtypeStruct((rows, lanes), out_dtype),
        grid_spec=pltpu.PrefetchScalarGridSpec(
            num_scalar_prefetch=0,
            grid=grid,
            in_specs=[pl.BlockSpec((block_rows, lanes), lambda i: (i, 0))],
            out_specs=pl.BlockSpec((block_rows, lanes), lambda i: (i, 0)),
        ),
        compiler_params=pltpu.CompilerParams(
            dimension_semantics=("parallel",),
            vmem_limit_bytes=int(vmem_limit),
        ),
        cost_estimate=cost,
    )(x2d)

    return out2d.reshape(orig_shape)


if __name__ == "__main__":
    key = jax.random.PRNGKey(0)
    k_small, k_big, k_u8 = jax.random.split(key, 3)

    # 1) Small NCHW float32 input (single full-extent block, no padding).
    x_small = jax.random.uniform(k_small, (2, 4, 16, 16), dtype=jnp.float32) * 255.0
    y_small = lambda_layer(x_small)
    jax.block_until_ready(y_small)
    ref_small = x_small / 127.5 - 1.0
    assert y_small.shape == x_small.shape and y_small.dtype == x_small.dtype
    assert jnp.allclose(y_small, ref_small, atol=1e-5, rtol=1e-5)

    # 2) Larger float32 input: lane-dense 1024-wide split, multi-step grid with
    #    a partial boundary block -- no pad / slice anywhere.
    x_big = jax.random.uniform(k_big, (4, 3, 240, 320), dtype=jnp.float32) * 255.0
    y_big = lambda_layer(x_big)
    jax.block_until_ready(y_big)
    ref_big = x_big / 127.5 - 1.0
    assert y_big.shape == x_big.shape and y_big.dtype == x_big.dtype
    assert jnp.allclose(y_big, ref_big, atol=1e-5, rtol=1e-5)

    # 3) uint8 image input whose element count is NOT a multiple of 128:
    #    takes the full-extent-lane fallback (396 x 200), cast to f32 in-kernel.
    x_u8 = jax.random.randint(k_u8, (2, 3, 66, 200), 0, 256, dtype=jnp.int32).astype(jnp.uint8)
    y_u8 = lambda_layer(x_u8)
    jax.block_until_ready(y_u8)
    ref_u8 = x_u8.astype(jnp.float32) / 127.5 - 1.0
    assert y_u8.shape == x_u8.shape and y_u8.dtype == jnp.float32
    assert jnp.allclose(y_u8, ref_u8, atol=1e-5, rtol=1e-5)

    # 4) uint8 image input with opt-in bf16 output (lower write traffic).
    y_bf16 = lambda_layer(x_u8, out_dtype=jnp.bfloat16)
    jax.block_until_ready(y_bf16)
    assert y_bf16.shape == x_u8.shape and y_bf16.dtype == jnp.bfloat16
    assert jnp.allclose(y_bf16.astype(jnp.float32), ref_u8, atol=2e-2, rtol=2e-2)

    print("KERNEL_OK")
</pallas_src>

<mosaic_0001>
module attributes {stable_mosaic.version = 11 : i64} {
  func.func @_lambda_kernel(%arg0: i32, %arg1: memref<2x1024xf32, #tpu.memory_space<vmem>>, %arg2: memref<2x1024xf32, #tpu.memory_space<vmem>>) attributes {dimension_semantics = [#tpu.dimension_semantics<parallel>], iteration_bounds = array<i64: 1>, scalar_prefetch = 0 : i64, scratch_operands = 0 : i64, tpu.core_type = #tpu.core_type<tc>, window_params = [{transform_indices = @transform_0, window_bounds = array<i64: 2, 1024>}, {transform_indices = @transform_1, window_bounds = array<i64: 2, 1024>}]} {
    %c0 = arith.constant 0 : index
    %c0_0 = arith.constant 0 : index
    %0 = vector.load %arg1[%c0, %c0_0] : memref<2x1024xf32, #tpu.memory_space<vmem>>, vector<2x1024xf32>
    %cst = arith.constant 0.00784313772 : f32
    %1 = vector.broadcast %cst : f32 to vector<2x1024xf32>
    %2 = arith.mulf %0, %1 : vector<2x1024xf32>
    %cst_1 = arith.constant 1.000000e+00 : f32
    %3 = vector.broadcast %cst_1 : f32 to vector<2x1024xf32>
    %4 = arith.subf %2, %3 : vector<2x1024xf32>
    %c0_2 = arith.constant 0 : index
    %c0_3 = arith.constant 0 : index
    %5 = vector.load %arg2[%c0_2, %c0_3] : memref<2x1024xf32, #tpu.memory_space<vmem>>, vector<2x1024xf32>
    tpu.vector_store %arg2[%c0_2, %c0_3], %4 {strides = array<i32>} : memref<2x1024xf32, #tpu.memory_space<vmem>>, vector<2x1024xf32>,
    return
  }
  func.func @transform_0(%arg0: i32) -> (i32, i32) {
    %c0_i32 = arith.constant 0 : i32
    %c0_i32_0 = arith.constant 0 : i32
    return %arg0, %c0_i32 : i32, i32
  }
  func.func @transform_1(%arg0: i32) -> (i32, i32) {
    %c0_i32 = arith.constant 0 : i32
    %c0_i32_0 = arith.constant 0 : i32
    return %arg0, %c0_i32 : i32, i32
  }
}

</mosaic_0001>

<llo_original>
// kernel: tpu_custom_call.1
$region0: #{tpu_custom_call.1}
  #allocation0 [shape = 'u32[]', space=smem, size = 0x4, offset = 0x4, fixed_abs, tag = 'smem constant byte address 0x4 - core index']
  #allocation1 [shape = 'u32[144,128]{1,0:T(1,128)}', space=vmem, size = 0x12000, scoped, tag = 'internal scratch']
  %s0 = inlined_call_operand.hbm [shape: f32[2,1024], index: 0, kind: input, shape index: {}]
  %s1 = inlined_call_operand.hbm [shape: f32[2,1024], index: 1, kind: output, shape index: {}]
  %s2 = sld [smem:[#allocation0]]
  $region18: #{tpu_custom_call.1} parent=0
    _
  %s4 = ssub.s32 1, %s2
  %s5 = scalar_select 0, %s4, %s2
  $region1: #{tpu_custom_call.1} parent=0
    #allocation2 [shape = 'u8[8192]{0}', space=vmem, size = 0x2000, scoped, tag = 'input window, operand 0, single buffered']
    #allocation3 [shape = 's32[1]{0}', space=sflag, size = 0x4, scoped, tag = 'scoped memory for tpu_custom_call.1']
    #allocation4 [shape = 's32[1]{0}', space=sflag, size = 0x4, scoped, tag = 'scoped memory for tpu_custom_call.1']
    #allocation5 [shape = 'u8[8192]{0}', space=vmem, size = 0x2000, scoped, tag = 'output window, operand 0, single buffered']
    %6 = vsyncpa [#allocation3], 0
    %7 = vsyncpa [#allocation4], 0
    // Predicated region
    $region2: #{tpu_custom_call.1} parent=1 // pred_check
      _
    $region3: #{tpu_custom_call.1} parent=1 // pred_check_branch
      %9 = sbr.rel (0) target = $region5
    $region4: #{tpu_custom_call.1} parent=1 // pred_region
      %s11 = ssub.s32 256, 256
      %12 = vsyncadd [#allocation3], %s11
      %s14 = sshll.u32 [#allocation2], 4
      %s15 = int_to_ptr.vmem [resolvable:$true] %s14
      %17 = dma.hbm_to_vmem [thread:$0]  %s0, 256, %s15, [#allocation3]
    $region5: #{tpu_custom_call.1} parent=1 // pred_fallthru
      _
    // Predicated region
    $region6: #{tpu_custom_call.1} parent=1 // pred_check
      _
    $region7: #{tpu_custom_call.1} parent=1 // pred_check_branch
      %19 = sbr.rel (0) target = $region9
    $region8: #{tpu_custom_call.1} parent=1 // pred_region
      %20 = dma.done [#allocation3], 256
    $region9: #{tpu_custom_call.1} parent=1 // pred_fallthru
      _
    %v21 = vld [vmem:[#allocation2] sm:$0xff]
    %v22 = vld [vmem:[#allocation2 + $0x8] sm:$0xff]
    %v23 = vmul.f32 %v21, 0.007843138
    %v24 = vmul.f32 %v22, 0.007843138
    %v25 = vsub.f32 %v23, 1.0
    %v26 = vsub.f32 %v24, 1.0
    %27 = vst [vmem:[#allocation5] sm:$0xff] %v25
    %28 = vst [vmem:[#allocation5 + $0x8] sm:$0xff] %v26
    // Predicated region
    $region10: #{tpu_custom_call.1} parent=1 // pred_check
      _
    $region11: #{tpu_custom_call.1} parent=1 // pred_check_branch
      %30 = sbr.rel (0) target = $region13
    $region12: #{tpu_custom_call.1} parent=1 // pred_region
      %s32 = ssub.s32 256, 256
      %33 = vsyncadd [#allocation4], %s32
      %s35 = sshll.u32 [#allocation5], 4
      %s36 = int_to_ptr.vmem [resolvable:$true] %s35
      %38 = dma.vmem_to_hbm [thread:$0]  %s36, 256, %s1, [#allocation4]
    $region13: #{tpu_custom_call.1} parent=1 // pred_fallthru
      _
    // Predicated region
    $region14: #{tpu_custom_call.1} parent=1 // pred_check
      _
    $region15: #{tpu_custom_call.1} parent=1 // pred_check_branch
      %40 = sbr.rel (0) target = $region17
    $region16: #{tpu_custom_call.1} parent=1 // pred_region
      %41 = dma.done [#allocation4], 256
    $region17: #{tpu_custom_call.1} parent=1 // pred_fallthru
      _
    %42 = vsyncpa [#allocation3], 1
    %43 = vsyncpa [#allocation4], 1

</llo_original>
